<compile_context>
chip_gen: v7x
topology: tpu7x:2x2x1
jax: 0.10.0
libtpu: 0.0.40
codegen_flags: <defaults>
</compile_context>

<pallas_src>
import jax
import jax.numpy as jnp
import numpy as np
from jax.experimental import pallas as pl
from jax.experimental.pallas import tpu as pltpu

_LAYERS = ((4, 2), (2, 2), (2, 2), (2, 1))   # (kernel, stride) per conv
_MAX_TILE = 2048                             # batch rows per grid step


def _out_dim(n, k, s):
    return (n - k) // s + 1


def _conv_to_dense(w, h_in, w_in, k, s, dtype=jnp.bfloat16):
    """Fold a 1->1 channel VALID conv (k, stride s) over an (h_in, w_in) grid
    into a dense (h_in*w_in, h_out*w_out) matrix so that
    out_flat = in_flat @ M  reproduces the conv (row-major flattening)."""
    h_out = _out_dim(h_in, k, s)
    w_out = _out_dim(w_in, k, s)
    rows, cols, widx = [], [], []
    for i in range(h_out):
        for j in range(w_out):
            for p in range(k):
                for q in range(k):
                    rows.append((i * s + p) * w_in + (j * s + q))
                    cols.append(i * w_out + j)
                    widx.append(p * k + q)
    vals = w.reshape(-1)[np.asarray(widx)].astype(dtype)
    m = jnp.zeros((h_in * w_in, h_out * w_out), dtype)
    m = m.at[np.asarray(rows), np.asarray(cols)].set(vals)
    return m, h_out, w_out


def _pick_batch_tile(B, max_tile=_MAX_TILE):
    """Largest batch tile <= max_tile (multiple of 8), but always >= 2 grid
    steps when the batch is big enough so both v7x TensorCores get work."""
    if B < 16:
        return B                               # one (possibly tiny) block
    half = (((B + 1) // 2) + 7) // 8 * 8       # ceil(B/2) rounded up to 8
    return min(max_tile, half)


def surrogate_kernel(x_ref, w0_ref, w1_ref, w2_ref, w3_ref, b_ref, o_ref):
    """x_ref: (tile, H*W) VMEM (natural batch-major layout).
    w*_ref: dense bf16 conv-as-matmul weights, resident in VMEM.
    b_ref: (4,) f32 SMEM.  o_ref: (tile, 1) f32 VMEM."""
    h = x_ref[...].astype(jnp.bfloat16)        # no-op if caller ships bf16
    h = jnp.dot(h, w0_ref[...], preferred_element_type=jnp.float32)
    h = jnp.maximum(h + b_ref[0], 0.0)
    h = jnp.dot(h.astype(jnp.bfloat16), w1_ref[...],
                preferred_element_type=jnp.float32)
    h = jnp.maximum(h + b_ref[1], 0.0)
    h = jnp.dot(h.astype(jnp.bfloat16), w2_ref[...],
                preferred_element_type=jnp.float32)
    h = jnp.maximum(h + b_ref[2], 0.0)
    h = jnp.dot(h.astype(jnp.bfloat16), w3_ref[...],
                preferred_element_type=jnp.float32)
    h = jnp.maximum(h + b_ref[3], 0.0)
    o_ref[...] = h


def surrogate_forward(x, w0, w1, w2, w3, biases):
    B, H, W = x.shape
    # The conv chain must reduce the spatial dims to exactly 1x1 for the
    # triple squeeze to yield (B,)  (e.g. H = W = 18).
    h, w = H, W
    for (k, s) in _LAYERS:
        h, w = _out_dim(h, k, s), _out_dim(w, k, s)
    assert (h, w) == (1, 1), "spatial dims must reduce to 1x1 (e.g. H=W=18)"

    HW = H * W
    x2d = x.reshape(B, HW)                     # free view, no HBM pass

    # Tiny dense conv-as-matmul weights (built once, bf16 for the MXU).
    ws = (w0, w1, w2, w3)
    mats = []
    hh, ww = H, W
    for (k, s), wm in zip(_LAYERS, ws):
        m, hh, ww = _conv_to_dense(wm, hh, ww, k, s)
        mats.append(m)
    m0, m1, m2, m3 = mats

    tile = _pick_batch_tile(B)
    grid = (pl.cdiv(B, tile),)

    out = pl.pallas_call(
        surrogate_kernel,
        out_shape=jax.ShapeDtypeStruct((B, 1), jnp.float32),
        grid=grid,
        in_specs=[
            # Batch-tiled input, double-buffered by Pallas.
            pl.BlockSpec((tile, HW), lambda i: (i, 0)),
            # Dense weights: constant index_map -> fetched once, resident.
            pl.BlockSpec(m0.shape, lambda i: (0, 0)),
            pl.BlockSpec(m1.shape, lambda i: (0, 0)),
            pl.BlockSpec(m2.shape, lambda i: (0, 0)),
            pl.BlockSpec(m3.shape, lambda i: (0, 0)),
            pl.BlockSpec(memory_space=pltpu.MemorySpace.SMEM),   # biases (4,)
        ],
        out_specs=pl.BlockSpec((tile, 1), lambda i: (i, 0)),
        compiler_params=pltpu.CompilerParams(
            dimension_semantics=("parallel",)),   # shard batch tiles on v7x TCs
    )(x2d, m0, m1, m2, m3, biases.astype(jnp.float32))

    return out.reshape(B)   # matches out.squeeze(1).squeeze(1).squeeze(1)


def reference(x, w0, w1, w2, w3, biases):
    """Pure-JAX f32 reference (NCHW valid convs), mirrors the PyTorch forward."""
    out = x[:, None, :, :]
    ws = [w0, w1, w2, w3]
    strides = [2, 2, 2, 1]
    for i in range(4):
        wm = ws[i][None, None, :, :]  # OIHW
        out = jax.lax.conv_general_dilated(
            out, wm, (strides[i], strides[i]), "VALID",
            dimension_numbers=("NCHW", "OIHW", "NCHW"))
        out = jnp.maximum(out + biases[i], 0.0)
    return out.reshape(x.shape[0])


if __name__ == "__main__":
    key = jax.random.PRNGKey(0)
    kx, kw0, kw1, kw2, kw3, kb = jax.random.split(key, 6)

    B, H, W = 2, 18, 18   # 18 -> 8 -> 4 -> 2 -> 1, so the final squeeze gives (B,)
    x = jax.random.uniform(kx, (B, H, W), jnp.float32)

    # Deterministic synthetic parameters (Conv2d(1,1,k) -> weight (k,k), scalar bias).
    w0 = jax.random.uniform(kw0, (4, 4), jnp.float32, 0.05, 0.30)
    w1 = jax.random.uniform(kw1, (2, 2), jnp.float32, 0.05, 0.30)
    w2 = jax.random.uniform(kw2, (2, 2), jnp.float32, 0.05, 0.30)
    w3 = jax.random.uniform(kw3, (2, 2), jnp.float32, 0.05, 0.30)
    biases = jax.random.uniform(kb, (4,), jnp.float32, -0.05, 0.05)

    out = surrogate_forward(x, w0, w1, w2, w3, biases)
    out = jax.block_until_ready(out)

    ref = reference(x, w0, w1, w2, w3, biases)
    assert out.shape == (B,)
    # bf16 matmul operands (f32 accumulate) -> bf16-level tolerance vs f32 ref.
    np.testing.assert_allclose(np.asarray(out), np.asarray(ref),
                               rtol=2e-2, atol=2e-3)
    print("KERNEL_OK")
</pallas_src>

<mosaic_0001>
module attributes {stable_mosaic.version = 11 : i64} {
  func.func @surrogate_kernel(%arg0: i32, %arg1: memref<2x324xf32, #tpu.memory_space<vmem>>, %arg2: memref<324x64xbf16, #tpu.memory_space<vmem>>, %arg3: memref<64x16xbf16, #tpu.memory_space<vmem>>, %arg4: memref<16x4xbf16, #tpu.memory_space<vmem>>, %arg5: memref<4x1xbf16, #tpu.memory_space<vmem>>, %arg6: memref<4xf32, #tpu.memory_space<smem>>, %arg7: memref<2x1xf32, #tpu.memory_space<vmem>>) attributes {dimension_semantics = [#tpu.dimension_semantics<parallel>], iteration_bounds = array<i64: 1>, scalar_prefetch = 0 : i64, scratch_operands = 0 : i64, tpu.core_type = #tpu.core_type<tc>, window_params = [{transform_indices = @transform_0, window_bounds = array<i64: 2, 324>}, {pipeline_mode = #tpu.pipeline_mode<synchronous>, transform_indices = @transform_1, window_bounds = array<i64: 324, 64>}, {pipeline_mode = #tpu.pipeline_mode<synchronous>, transform_indices = @transform_2, window_bounds = array<i64: 64, 16>}, {pipeline_mode = #tpu.pipeline_mode<synchronous>, transform_indices = @transform_3, window_bounds = array<i64: 16, 4>}, {pipeline_mode = #tpu.pipeline_mode<synchronous>, transform_indices = @transform_4, window_bounds = array<i64: 4, 1>}, {transform_indices = @transform_5, window_bounds = array<i64: 4>}, {transform_indices = @transform_6, window_bounds = array<i64: 2, 1>}]} {
    %c0 = arith.constant 0 : index
    %c0_0 = arith.constant 0 : index
    %0 = vector.load %arg1[%c0, %c0_0] : memref<2x324xf32, #tpu.memory_space<vmem>>, vector<2x324xf32>
    %1 = arith.truncf %0 : vector<2x324xf32> to vector<2x324xbf16>
    %c0_1 = arith.constant 0 : index
    %c0_2 = arith.constant 0 : index
    %2 = vector.load %arg2[%c0_1, %c0_2] : memref<324x64xbf16, #tpu.memory_space<vmem>>, vector<324x64xbf16>
    %cst = arith.constant dense<0.000000e+00> : vector<2x64xf32>
    %3 = tpu.matmul %1, %2, %cst {dimension_numbers = #tpu.dot_dimension_numbers<[1], [0], [0], [1], [0, 0, 1, 1], [], []>} : vector<2x324xbf16>, vector<324x64xbf16>, vector<2x64xf32> -> vector<2x64xf32>
    %c0_3 = arith.constant 0 : index
    %4 = memref.load %arg6[%c0_3] : memref<4xf32, #tpu.memory_space<smem>>
    %5 = vector.broadcast %4 : f32 to vector<2x64xf32>
    %6 = arith.addf %3, %5 : vector<2x64xf32>
    %cst_4 = arith.constant 0.000000e+00 : f32
    %7 = vector.broadcast %cst_4 : f32 to vector<2x64xf32>
    %8 = arith.maximumf %6, %7 : vector<2x64xf32>
    %9 = arith.truncf %8 : vector<2x64xf32> to vector<2x64xbf16>
    %c0_5 = arith.constant 0 : index
    %c0_6 = arith.constant 0 : index
    %10 = vector.load %arg3[%c0_5, %c0_6] : memref<64x16xbf16, #tpu.memory_space<vmem>>, vector<64x16xbf16>
    %cst_7 = arith.constant dense<0.000000e+00> : vector<2x16xf32>
    %11 = tpu.matmul %9, %10, %cst_7 {dimension_numbers = #tpu.dot_dimension_numbers<[1], [0], [0], [1], [0, 0, 1, 1], [], []>} : vector<2x64xbf16>, vector<64x16xbf16>, vector<2x16xf32> -> vector<2x16xf32>
    %c1 = arith.constant 1 : index
    %12 = memref.load %arg6[%c1] : memref<4xf32, #tpu.memory_space<smem>>
    %13 = vector.broadcast %12 : f32 to vector<2x16xf32>
    %14 = arith.addf %11, %13 : vector<2x16xf32>
    %cst_8 = arith.constant 0.000000e+00 : f32
    %15 = vector.broadcast %cst_8 : f32 to vector<2x16xf32>
    %16 = arith.maximumf %14, %15 : vector<2x16xf32>
    %17 = arith.truncf %16 : vector<2x16xf32> to vector<2x16xbf16>
    %c0_9 = arith.constant 0 : index
    %c0_10 = arith.constant 0 : index
    %18 = vector.load %arg4[%c0_9, %c0_10] : memref<16x4xbf16, #tpu.memory_space<vmem>>, vector<16x4xbf16>
    %cst_11 = arith.constant dense<0.000000e+00> : vector<2x4xf32>
    %19 = tpu.matmul %17, %18, %cst_11 {dimension_numbers = #tpu.dot_dimension_numbers<[1], [0], [0], [1], [0, 0, 1, 1], [], []>} : vector<2x16xbf16>, vector<16x4xbf16>, vector<2x4xf32> -> vector<2x4xf32>
    %c2 = arith.constant 2 : index
    %20 = memref.load %arg6[%c2] : memref<4xf32, #tpu.memory_space<smem>>
    %21 = vector.broadcast %20 : f32 to vector<2x4xf32>
    %22 = arith.addf %19, %21 : vector<2x4xf32>
    %cst_12 = arith.constant 0.000000e+00 : f32
    %23 = vector.broadcast %cst_12 : f32 to vector<2x4xf32>
    %24 = arith.maximumf %22, %23 : vector<2x4xf32>
    %25 = arith.truncf %24 : vector<2x4xf32> to vector<2x4xbf16>
    %c0_13 = arith.constant 0 : index
    %c0_14 = arith.constant 0 : index
    %26 = vector.load %arg5[%c0_13, %c0_14] : memref<4x1xbf16, #tpu.memory_space<vmem>>, vector<4x1xbf16>
    %cst_15 = arith.constant dense<0.000000e+00> : vector<2x1xf32>
    %27 = tpu.matmul %25, %26, %cst_15 {dimension_numbers = #tpu.dot_dimension_numbers<[1], [0], [0], [1], [0, 0, 1, 1], [], []>} : vector<2x4xbf16>, vector<4x1xbf16>, vector<2x1xf32> -> vector<2x1xf32>
    %c3 = arith.constant 3 : index
    %28 = memref.load %arg6[%c3] : memref<4xf32, #tpu.memory_space<smem>>
    %29 = vector.broadcast %28 : f32 to vector<2x1xf32>
    %30 = arith.addf %27, %29 : vector<2x1xf32>
    %cst_16 = arith.constant 0.000000e+00 : f32
    %31 = vector.broadcast %cst_16 : f32 to vector<2x1xf32>
    %32 = arith.maximumf %30, %31 : vector<2x1xf32>
    %c0_17 = arith.constant 0 : index
    %c0_18 = arith.constant 0 : index
    %33 = vector.load %arg7[%c0_17, %c0_18] : memref<2x1xf32, #tpu.memory_space<vmem>>, vector<2x1xf32>
    tpu.vector_store %arg7[%c0_17, %c0_18], %32 {strides = array<i32>} : memref<2x1xf32, #tpu.memory_space<vmem>>, vector<2x1xf32>,
    return
  }
  func.func @transform_0(%arg0: i32) -> (i32, i32) {
    %c0_i32 = arith.constant 0 : i32
    %c0_i32_0 = arith.constant 0 : i32
    return %arg0, %c0_i32 : i32, i32
  }
  func.func @transform_1(%arg0: i32) -> (i32, i32) {
    %c0_i32 = arith.constant 0 : i32
    %c0_i32_0 = arith.constant 0 : i32
    %c0_i32_1 = arith.constant 0 : i32
    return %c0_i32, %c0_i32_0 : i32, i32
  }
  func.func @transform_2(%arg0: i32) -> (i32, i32) {
    %c0_i32 = arith.constant 0 : i32
    %c0_i32_0 = arith.constant 0 : i32
    %c0_i32_1 = arith.constant 0 : i32
    return %c0_i32, %c0_i32_0 : i32, i32
  }
  func.func @transform_3(%arg0: i32) -> (i32, i32) {
    %c0_i32 = arith.constant 0 : i32
    %c0_i32_0 = arith.constant 0 : i32
    %c0_i32_1 = arith.constant 0 : i32
    return %c0_i32, %c0_i32_0 : i32, i32
  }
  func.func @transform_4(%arg0: i32) -> (i32, i32) {
    %c0_i32 = arith.constant 0 : i32
    %c0_i32_0 = arith.constant 0 : i32
    %c0_i32_1 = arith.constant 0 : i32
    return %c0_i32, %c0_i32_0 : i32, i32
  }
  func.func @transform_5(%arg0: i32) -> i32 {
    %c0_i32 = arith.constant 0 : i32
    %c0_i32_0 = arith.constant 0 : i32
    return %c0_i32 : i32
  }
  func.func @transform_6(%arg0: i32) -> (i32, i32) {
    %c0_i32 = arith.constant 0 : i32
    %c0_i32_0 = arith.constant 0 : i32
    return %arg0, %c0_i32 : i32, i32
  }
}

</mosaic_0001>

<llo_original>
// kernel: tpu_custom_call.1
$region0: #{tpu_custom_call.1}
  #allocation0 [shape = 'u32[]', space=smem, size = 0x4, offset = 0x4, fixed_abs, tag = 'smem constant byte address 0x4 - core index']
  #allocation1 [shape = 'u32[144,128]{1,0:T(1,128)}', space=vmem, size = 0x12000, scoped, tag = 'internal scratch']
  %s0 = inlined_call_operand.vmem [shape: f32[2,324], index: 0, kind: input, shape index: {}]
  %s1 = inlined_call_operand.vmem [shape: bf16[324,64], index: 1, kind: input, shape index: {}]
  %s2 = inlined_call_operand.vmem [shape: bf16[64,16], index: 2, kind: input, shape index: {}]
  %s3 = inlined_call_operand.vmem [shape: bf16[16,4], index: 3, kind: input, shape index: {}]
  %s4 = inlined_call_operand.vmem [shape: bf16[4,1], index: 4, kind: input, shape index: {}]
  %s5 = inlined_call_operand.vmem [shape: f32[4], index: 5, kind: input, shape index: {}]
  %s6 = inlined_call_operand.vmem [shape: f32[2,1], index: 6, kind: output, shape index: {}]
  %s7 = sld [smem:[#allocation0]]
  $region38: #{tpu_custom_call.1} parent=0
    _
  %s9 = ssub.s32 1, %s7
  %s10 = scalar_select 0, %s9, %s7
  $region1: #{tpu_custom_call.1} parent=0
    #allocation2 [shape = 'u8[512]{0}', space=smem, size = 0x200, scoped, tag = 'input window, operand 5, single buffered']
    #allocation3 [shape = 's32[1]{0}', space=sflag, size = 0x4, scoped, tag = 'scoped memory for tpu_custom_call.1']
    %11 = vsyncpa [#allocation3], 0
    // Predicated region
    $region2: #{tpu_custom_call.1} parent=1 // pred_check
      _
    $region3: #{tpu_custom_call.1} parent=1 // pred_check_branch
      %13 = sbr.rel (0) target = $region5
    $region4: #{tpu_custom_call.1} parent=1 // pred_region
      _
    $region5: #{tpu_custom_call.1} parent=1 // pred_fallthru
      _
    // Predicated region
    $region6: #{tpu_custom_call.1} parent=1 // pred_check
      _
    $region7: #{tpu_custom_call.1} parent=1 // pred_check_branch
      %15 = sbr.rel (0) target = $region9
    $region8: #{tpu_custom_call.1} parent=1 // pred_region
      _
    $region9: #{tpu_custom_call.1} parent=1 // pred_fallthru
      _
    // Predicated region
    $region10: #{tpu_custom_call.1} parent=1 // pred_check
      _
    $region11: #{tpu_custom_call.1} parent=1 // pred_check_branch
      %17 = sbr.rel (0) target = $region13
    $region12: #{tpu_custom_call.1} parent=1 // pred_region
      _
    $region13: #{tpu_custom_call.1} parent=1 // pred_fallthru
      _
    // Predicated region
    $region14: #{tpu_custom_call.1} parent=1 // pred_check
      _
    $region15: #{tpu_custom_call.1} parent=1 // pred_check_branch
      %19 = sbr.rel (0) target = $region17
    $region16: #{tpu_custom_call.1} parent=1 // pred_region
      _
    $region17: #{tpu_custom_call.1} parent=1 // pred_fallthru
      _
    // Predicated region
    $region18: #{tpu_custom_call.1} parent=1 // pred_check
      _
    $region19: #{tpu_custom_call.1} parent=1 // pred_check_branch
      %21 = sbr.rel (0) target = $region21
    $region20: #{tpu_custom_call.1} parent=1 // pred_region
      _
    $region21: #{tpu_custom_call.1} parent=1 // pred_fallthru
      _
    // Predicated region
    $region22: #{tpu_custom_call.1} parent=1 // pred_check
      _
    $region23: #{tpu_custom_call.1} parent=1 // pred_check_branch
      %23 = sbr.rel (0) target = $region25
    $region24: #{tpu_custom_call.1} parent=1 // pred_region
      %s25 = ssub.s32 16, 16
      %26 = vsyncadd [#allocation3], %s25
      %s28 = sshll.u32 %s5, 4
      %s29 = int_to_ptr.vmem [resolvable:$true] %s28
      %31 = dma.vmem_to_smem %s29, 16, [#allocation2], [#allocation3]
    $region25: #{tpu_custom_call.1} parent=1 // pred_fallthru
      _
    // Predicated region
    $region26: #{tpu_custom_call.1} parent=1 // pred_check
      _
    $region27: #{tpu_custom_call.1} parent=1 // pred_check_branch
      %33 = sbr.rel (0) target = $region29
    $region28: #{tpu_custom_call.1} parent=1 // pred_region
      %34 = dma.done [#allocation3], 16
    $region29: #{tpu_custom_call.1} parent=1 // pred_fallthru
      _
    %35 = sfence
    %v37 = vld [vmem:[%s0] sm:$0x3f]
    %v39 = vcombine.high %v37, %v37
    %v41 = vunpack.c.l.s4 1983009808
    %v42 = vunpack.c.0.s8 %v41
    %v43 = vlaneseq
    %v44 = vshrl.u32 %v43, 7
    %v45 = vsub.s32 %v42, %v44
    %v46 = vrot.slane %v37, %v45
    %v48 = vunpack.c.l.s4 1983009808
    %v49 = vunpack.c.0.s8 %v48
    %v50 = vlaneseq
    %v51 = vshrl.u32 %v50, 7
    %v52 = vsub.s32 %v49, %v51
    %v53 = vrot.slane %v39, %v52
    %v54 = vcombine.high %v46, %v46
    %v58 = vpack.c.bf16 %v46, %v46
    %v59 = vpack.c.bf16 %v54, %v54
    %v60 = vpack.c.bf16 %v53, %v53
    %v61 = vld [vmem:[%s1] sm:$0xf]
    %v62 = vld [vmem:[%s1 + $0x4] sm:$0xf]
    %v63 = vld [vmem:[%s1 + $0x8] sm:$0xf]
    %v64 = vld [vmem:[%s1 + $0xc] sm:$0xf]
    %v65 = vld [vmem:[%s1 + $0x10] sm:$0xf]
    %v66 = vld [vmem:[%s1 + $0x14] sm:$0xf]
    %v67 = vld [vmem:[%s1 + $0x18] sm:$0xf]
    %v68 = vld [vmem:[%s1 + $0x1c] sm:$0xf]
    %v69 = vld [vmem:[%s1 + $0x20] sm:$0xf]
    %v70 = vld [vmem:[%s1 + $0x24] sm:$0xf]
    %v71 = vld [vmem:[%s1 + $0x28] sm:$0xf]
    %v72 = vld [vmem:[%s1 + $0x2c] sm:$0xf]
    %v73 = vld [vmem:[%s1 + $0x30] sm:$0xf]
    %v74 = vld [vmem:[%s1 + $0x34] sm:$0xf]
    %v75 = vld [vmem:[%s1 + $0x38] sm:$0xf]
    %v76 = vld [vmem:[%s1 + $0x3c] sm:$0xf]
    %v77 = vld [vmem:[%s1 + $0x40] sm:$0xf]
    %v78 = vld [vmem:[%s1 + $0x44] sm:$0xf]
    %v79 = vld [vmem:[%s1 + $0x48] sm:$0xf]
    %v80 = vld [vmem:[%s1 + $0x4c] sm:$0xf]
    %v81 = vld [vmem:[%s1 + $0x50] sm:$0xf]
    %v82 = vld [vmem:[%s1 + $0x54] sm:$0xf]
    %v83 = vld [vmem:[%s1 + $0x58] sm:$0xf]
    %v84 = vld [vmem:[%s1 + $0x5c] sm:$0xf]
    %v85 = vld [vmem:[%s1 + $0x60] sm:$0xf]
    %v86 = vld [vmem:[%s1 + $0x64] sm:$0xf]
    %v87 = vld [vmem:[%s1 + $0x68] sm:$0xf]
    %v88 = vld [vmem:[%s1 + $0x6c] sm:$0xf]
    %v89 = vld [vmem:[%s1 + $0x70] sm:$0xf]
    %v90 = vld [vmem:[%s1 + $0x74] sm:$0xf]
    %v91 = vld [vmem:[%s1 + $0x78] sm:$0xf]
    %v92 = vld [vmem:[%s1 + $0x7c] sm:$0xf]
    %v93 = vld [vmem:[%s1 + $0x80] sm:$0xf]
    %v94 = vld [vmem:[%s1 + $0x84] sm:$0xf]
    %v95 = vld [vmem:[%s1 + $0x88] sm:$0xf]
    %v96 = vld [vmem:[%s1 + $0x8c] sm:$0xf]
    %v97 = vld [vmem:[%s1 + $0x90] sm:$0xf]
    %v98 = vld [vmem:[%s1 + $0x94] sm:$0xf]
    %v99 = vld [vmem:[%s1 + $0x98] sm:$0xf]
    %v100 = vld [vmem:[%s1 + $0x9c] sm:$0xf]
    %v101 = vld [vmem:[%s1 + $0xa0] sm:$0x3]
    %s102 = sld [smem:[#allocation2]]
    %v103 = vstv %s102
    %v145 = vunpack.c.l.b16 %v61
    %v146 = vunpack.c.l.b16 %v62
    %v147 = vunpack.c.l.b16 %v63
    %v148 = vunpack.c.l.b16 %v64
    %v149 = vunpack.c.l.b16 %v65
    %v150 = vunpack.c.l.b16 %v66
    %v151 = vunpack.c.l.b16 %v67
    %v152 = vunpack.c.l.b16 %v68
    %v153 = vunpack.c.l.b16 %v69
    %v154 = vunpack.c.l.b16 %v70
    %v155 = vunpack.c.l.b16 %v71
    %v156 = vunpack.c.l.b16 %v72
    %v157 = vunpack.c.l.b16 %v73
    %v158 = vunpack.c.l.b16 %v74
    %v159 = vunpack.c.l.b16 %v75
    %v160 = vunpack.c.l.b16 %v76
    %v161 = vunpack.c.l.b16 %v77
    %v162 = vunpack.c.l.b16 %v78
    %v163 = vunpack.c.l.b16 %v79
    %v164 = vunpack.c.l.b16 %v80
    %v165 = vunpack.c.l.b16 %v81
    %v166 = vunpack.c.l.b16 %v82
    %v167 = vunpack.c.l.b16 %v83
    %v168 = vunpack.c.l.b16 %v84
    %v169 = vunpack.c.l.b16 %v85
    %v170 = vunpack.c.l.b16 %v86
    %v171 = vunpack.c.l.b16 %v87
    %v172 = vunpack.c.l.b16 %v88
    %v173 = vunpack.c.l.b16 %v89
    %v174 = vunpack.c.l.b16 %v90
    %v175 = vunpack.c.l.b16 %v91
    %v176 = vunpack.c.l.b16 %v92
    %v177 = vunpack.c.l.b16 %v93
    %v178 = vunpack.c.l.b16 %v94
    %v179 = vunpack.c.l.b16 %v95
    %v180 = vunpack.c.l.b16 %v96
    %v181 = vunpack.c.l.b16 %v97
    %v182 = vunpack.c.l.b16 %v98
    %v183 = vunpack.c.l.b16 %v99
    %v184 = vunpack.c.l.b16 %v100
    %v185 = vunpack.c.l.b16 %v101
    %v186 = vpack.c.b16 %v146, %v145
    %v187 = vpack.c.b16 %v148, %v147
    %v188 = vpack.c.b16 %v150, %v149
    %v189 = vpack.c.b16 %v152, %v151
    %v190 = vpack.c.b16 %v154, %v153
    %v191 = vpack.c.b16 %v156, %v155
    %v192 = vpack.c.b16 %v158, %v157
    %v193 = vpack.c.b16 %v160, %v159
    %v194 = vpack.c.b16 %v162, %v161
    %v195 = vpack.c.b16 %v164, %v163
    %v196 = vpack.c.b16 %v166, %v165
    %v197 = vpack.c.b16 %v168, %v167
    %v198 = vpack.c.b16 %v170, %v169
    %v199 = vpack.c.b16 %v172, %v171
    %v200 = vpack.c.b16 %v174, %v173
    %v201 = vpack.c.b16 %v176, %v175
    %v202 = vpack.c.b16 %v178, %v177
    %v203 = vpack.c.b16 %v180, %v179
    %v204 = vpack.c.b16 %v182, %v181
    %v205 = vpack.c.b16 %v184, %v183
    %v206 = vpack.c.b16 %v185, %v185
    %vm227 = vcmask 556032
    %v229 = vsel %vm227, %v60, 0
    %vm231 = vcmask 1041408
    %v233 = vsel %vm231, %v206, 0
    %235 = vmatprep.subr.bf16.mxu0 0
    %236 = vmatpush1.bf16.msra.mxu0 %v186
    %237 = vmatprep.subr.bf16.mxu0 0
    %238 = vmatpush1.bf16.msra.mxu0 %v187
    %239 = vmatprep.subr.bf16.mxu0 0
    %240 = vmatpush1.bf16.msra.mxu0 %v188
    %241 = vmatprep.subr.bf16.mxu0 0
    %242 = vmatpush1.bf16.msra.mxu0 %v189
    %243 = vmatprep.subr.bf16.mxu0 0
    %244 = vmatpush1.bf16.msra.mxu0 %v190
    %245 = vmatprep.subr.bf16.mxu0 0
    %246 = vmatpush1.bf16.msra.mxu0 %v191
    %247 = vmatprep.subr.bf16.mxu0 0
    %248 = vmatpush1.bf16.msra.mxu0 %v192
    %249 = vmatprep.subr.bf16.mxu0 0
    %250 = vmatpush1.bf16.msra.mxu0 %v193
    %251 = vmatprep.subr.bf16.mxu0 0
    %252 = vmatpush1.bf16.msra.mxu0 %v194
    %253 = vmatprep.subr.bf16.mxu0 0
    %254 = vmatpush1.bf16.msra.mxu0 %v195
    %255 = vmatprep.subr.bf16.mxu0 0
    %256 = vmatpush1.bf16.msra.mxu0 %v196
    %257 = vmatprep.subr.bf16.mxu0 0
    %258 = vmatpush1.bf16.msra.mxu0 %v197
    %259 = vmatprep.subr.bf16.mxu0 0
    %260 = vmatpush1.bf16.msra.mxu0 %v198
    %261 = vmatprep.subr.bf16.mxu0 0
    %262 = vmatpush1.bf16.msra.mxu0 %v199
    %263 = vmatprep.subr.bf16.mxu0 0
    %264 = vmatpush1.bf16.msra.mxu0 %v200
    %265 = vmatprep.subr.bf16.mxu0 0
    %266 = vmatpush1.bf16.msra.mxu0 %v201
    %267 = vmatprep.mubr.bf16.mxu0 %v59
    %268 = vmatmul.mubr.bf16.gmra.mrb[0].mxu0 %v58
    %v269 = vpop.f32.mrb[0].mxu0
    %v270 = vadd.f32 %v103, %v269
    %v271 = vpop.f32.mrb[0].mxu0
    %v272 = vpop.f32.mrb[0].mxu0
    %v273 = vpop.f32.mrb[0].mxu0
    %274 = vdwg.mxu0
    %275 = vmatprep.subr.bf16.mxu0 0
    %276 = vmatpush1.bf16.msra.mxu0 %v202
    %277 = vmatprep.subr.bf16.mxu0 0
    %278 = vmatpush1.bf16.msra.mxu0 %v203
    %279 = vmatprep.subr.bf16.mxu0 0
    %280 = vmatpush1.bf16.msra.mxu0 %v204
    %281 = vmatprep.subr.bf16.mxu0 0
    %282 = vmatpush1.bf16.msra.mxu0 %v205
    %283 = vmatprep.subr.bf16.mxu0 0
    %284 = vmatpush1.bf16.msra.mxu0 %v233
    %285 = vmatprep.subr.bf16.mxu0 0
    %286 = vmatpush1.bf16.msra.mxu0 0
    %287 = vmatprep.subr.bf16.mxu0 0
    %288 = vmatpush1.bf16.msra.mxu0 0
    %289 = vmatprep.subr.bf16.mxu0 0
    %290 = vmatpush1.bf16.msra.mxu0 0
    %291 = vmatprep.subr.bf16.mxu0 0
    %292 = vmatpush1.bf16.msra.mxu0 0
    %293 = vmatprep.subr.bf16.mxu0 0
    %294 = vmatpush1.bf16.msra.mxu0 0
    %295 = vmatprep.subr.bf16.mxu0 0
    %296 = vmatpush1.bf16.msra.mxu0 0
    %297 = vmatprep.subr.bf16.mxu0 0
    %298 = vmatpush1.bf16.msra.mxu0 0
    %299 = vmatprep.subr.bf16.mxu0 0
    %300 = vmatpush1.bf16.msra.mxu0 0
    %301 = vmatprep.subr.bf16.mxu0 0
    %302 = vmatpush1.bf16.msra.mxu0 0
    %303 = vmatprep.subr.bf16.mxu0 0
    %304 = vmatpush1.bf16.msra.mxu0 0
    %305 = vmatprep.subr.bf16.mxu0 0
    %306 = vmatpush1.bf16.msra.mxu0 0
    %307 = vmatprep.mubr.bf16.mxu0 0
    %308 = vmatmul.mubr.bf16.gmra.mrb[0].mxu0 %v229
    %v309 = vpop.f32.mrb[0].mxu0
    %v310 = vadd.f32 %v270, %v309
    %v311 = vpop.f32.mrb[0].mxu0
    %v312 = vpop.f32.mrb[0].mxu0
    %v313 = vpop.f32.mrb[0].mxu0
    %314 = vdwg.mxu0
    %v315 = vmax.f32 %v310, 0.0
    %v316 = vpack.c.bf16 %v315, %v315
    %v317 = vld [vmem:[%s2] sm:$0xf]
    %v318 = vld [vmem:[%s2 + $0x4] sm:$0xf]
    %v319 = vld [vmem:[%s2 + $0x8] sm:$0xf]
    %v320 = vld [vmem:[%s2 + $0xc] sm:$0xf]
    %v321 = vld [vmem:[%s2 + $0x10] sm:$0xf]
    %v322 = vld [vmem:[%s2 + $0x14] sm:$0xf]
    %v323 = vld [vmem:[%s2 + $0x18] sm:$0xf]
    %v324 = vld [vmem:[%s2 + $0x1c] sm:$0xf]
    %s325 = sld [smem:[#allocation2 + $0x1]]
    %v326 = vstv %s325
    %v335 = vunpack.c.l.b16 %v317
    %v336 = vunpack.c.l.b16 %v318
    %v337 = vunpack.c.l.b16 %v319
    %v338 = vunpack.c.l.b16 %v320
    %v339 = vunpack.c.l.b16 %v321
    %v340 = vunpack.c.l.b16 %v322
    %v341 = vunpack.c.l.b16 %v323
    %v342 = vunpack.c.l.b16 %v324
    %v343 = vpack.c.b16 %v336, %v335
    %v344 = vpack.c.b16 %v338, %v337
    %v345 = vpack.c.b16 %v340, %v339
    %v346 = vpack.c.b16 %v342, %v341
    %vm351 = vcmask 523264
    %v353 = vsel %vm351, %v316, 0
    %355 = vmatprep.subr.bf16.mxu0 0
    %356 = vmatpush1.bf16.msra.mxu0 %v343
    %357 = vmatprep.subr.bf16.mxu0 0
    %358 = vmatpush1.bf16.msra.mxu0 %v344
    %359 = vmatprep.subr.bf16.mxu0 0
    %360 = vmatpush1.bf16.msra.mxu0 %v345
    %361 = vmatprep.subr.bf16.mxu0 0
    %362 = vmatpush1.bf16.msra.mxu0 %v346
    %363 = vmatprep.subr.bf16.mxu0 0
    %364 = vmatpush1.bf16.msra.mxu0 0
    %365 = vmatprep.subr.bf16.mxu0 0
    %366 = vmatpush1.bf16.msra.mxu0 0
    %367 = vmatprep.subr.bf16.mxu0 0
    %368 = vmatpush1.bf16.msra.mxu0 0
    %369 = vmatprep.subr.bf16.mxu0 0
    %370 = vmatpush1.bf16.msra.mxu0 0
    %371 = vmatprep.subr.bf16.mxu0 0
    %372 = vmatpush1.bf16.msra.mxu0 0
    %373 = vmatprep.subr.bf16.mxu0 0
    %374 = vmatpush1.bf16.msra.mxu0 0
    %375 = vmatprep.subr.bf16.mxu0 0
    %376 = vmatpush1.bf16.msra.mxu0 0
    %377 = vmatprep.subr.bf16.mxu0 0
    %378 = vmatpush1.bf16.msra.mxu0 0
    %379 = vmatprep.subr.bf16.mxu0 0
    %380 = vmatpush1.bf16.msra.mxu0 0
    %381 = vmatprep.subr.bf16.mxu0 0
    %382 = vmatpush1.bf16.msra.mxu0 0
    %383 = vmatprep.subr.bf16.mxu0 0
    %384 = vmatpush1.bf16.msra.mxu0 0
    %385 = vmatprep.subr.bf16.mxu0 0
    %386 = vmatpush1.bf16.msra.mxu0 0
    %387 = vmatprep.mubr.bf16.mxu0 0
    %388 = vmatmul.mubr.bf16.gmra.mrb[0].mxu0 %v353
    %v389 = vpop.f32.mrb[0].mxu0
    %v390 = vadd.f32 %v326, %v389
    %v391 = vpop.f32.mrb[0].mxu0
    %v392 = vpop.f32.mrb[0].mxu0
    %v393 = vpop.f32.mrb[0].mxu0
    %394 = vdwg.mxu0
    %v395 = vmax.f32 %v390, 0.0
    %v396 = vpack.c.bf16 %v395, %v395
    %v397 = vld [vmem:[%s3] sm:$0xf]
    %v398 = vld [vmem:[%s3 + $0x4] sm:$0xf]
    %s399 = sld [smem:[#allocation2 + $0x2]]
    %v400 = vstv %s399
    %v403 = vunpack.c.l.b16 %v397
    %v404 = vunpack.c.l.b16 %v398
    %v405 = vpack.c.b16 %v404, %v403
    %vm407 = vcmask 130048
    %v409 = vsel %vm407, %v396, 0
    %411 = vmatprep.subr.bf16.mxu0 0
    %412 = vmatpush1.bf16.msra.mxu0 %v405
    %413 = vmatprep.subr.bf16.mxu0 0
    %414 = vmatpush1.bf16.msra.mxu0 0
    %415 = vmatprep.subr.bf16.mxu0 0
    %416 = vmatpush1.bf16.msra.mxu0 0
    %417 = vmatprep.subr.bf16.mxu0 0
    %418 = vmatpush1.bf16.msra.mxu0 0
    %419 = vmatprep.subr.bf16.mxu0 0
    %420 = vmatpush1.bf16.msra.mxu0 0
    %421 = vmatprep.subr.bf16.mxu0 0
    %422 = vmatpush1.bf16.msra.mxu0 0
    %423 = vmatprep.subr.bf16.mxu0 0
    %424 = vmatpush1.bf16.msra.mxu0 0
    %425 = vmatprep.subr.bf16.mxu0 0
    %426 = vmatpush1.bf16.msra.mxu0 0
    %427 = vmatprep.subr.bf16.mxu0 0
    %428 = vmatpush1.bf16.msra.mxu0 0
    %429 = vmatprep.subr.bf16.mxu0 0
    %430 = vmatpush1.bf16.msra.mxu0 0
    %431 = vmatprep.subr.bf16.mxu0 0
    %432 = vmatpush1.bf16.msra.mxu0 0
    %433 = vmatprep.subr.bf16.mxu0 0
    %434 = vmatpush1.bf16.msra.mxu0 0
    %435 = vmatprep.subr.bf16.mxu0 0
    %436 = vmatpush1.bf16.msra.mxu0 0
    %437 = vmatprep.subr.bf16.mxu0 0
    %438 = vmatpush1.bf16.msra.mxu0 0
    %439 = vmatprep.subr.bf16.mxu0 0
    %440 = vmatpush1.bf16.msra.mxu0 0
    %441 = vmatprep.subr.bf16.mxu0 0
    %442 = vmatpush1.bf16.msra.mxu0 0
    %443 = vmatprep.mubr.bf16.mxu0 0
    %444 = vmatmul.mubr.bf16.gmra.mrb[0].mxu0 %v409
    %v445 = vpop.f32.mrb[0].mxu0
    %v446 = vadd.f32 %v400, %v445
    %v447 = vpop.f32.mrb[0].mxu0
    %v448 = vpop.f32.mrb[0].mxu0
    %v449 = vpop.f32.mrb[0].mxu0
    %450 = vdwg.mxu0
    %v451 = vmax.f32 %v446, 0.0
    %v452 = vpack.c.bf16 %v451, %v451
    %v453 = vld [vmem:[%s4] sm:$0x3]
    %s454 = sld [smem:[#allocation2 + $0x3]]
    %v455 = vstv %s454
    %vm456 = vcmask 31744
    %v458 = vsel %vm456, %v452, 0
    %v461 = vsel %vm231, %v453, 0
    %463 = vmatprep.subr.bf16.mxu0 0
    %464 = vmatpush1.bf16.msra.mxu0 %v461
    %465 = vmatprep.subr.bf16.mxu0 0
    %466 = vmatpush1.bf16.msra.mxu0 0
    %467 = vmatprep.subr.bf16.mxu0 0
    %468 = vmatpush1.bf16.msra.mxu0 0
    %469 = vmatprep.subr.bf16.mxu0 0
    %470 = vmatpush1.bf16.msra.mxu0 0
    %471 = vmatprep.subr.bf16.mxu0 0
    %472 = vmatpush1.bf16.msra.mxu0 0
    %473 = vmatprep.subr.bf16.mxu0 0
    %474 = vmatpush1.bf16.msra.mxu0 0
    %475 = vmatprep.subr.bf16.mxu0 0
    %476 = vmatpush1.bf16.msra.mxu0 0
    %477 = vmatprep.subr.bf16.mxu0 0
    %478 = vmatpush1.bf16.msra.mxu0 0
    %479 = vmatprep.subr.bf16.mxu0 0
    %480 = vmatpush1.bf16.msra.mxu0 0
    %481 = vmatprep.subr.bf16.mxu0 0
    %482 = vmatpush1.bf16.msra.mxu0 0
    %483 = vmatprep.subr.bf16.mxu0 0
    %484 = vmatpush1.bf16.msra.mxu0 0
    %485 = vmatprep.subr.bf16.mxu0 0
    %486 = vmatpush1.bf16.msra.mxu0 0
    %487 = vmatprep.subr.bf16.mxu0 0
    %488 = vmatpush1.bf16.msra.mxu0 0
    %489 = vmatprep.subr.bf16.mxu0 0
    %490 = vmatpush1.bf16.msra.mxu0 0
    %491 = vmatprep.subr.bf16.mxu0 0
    %492 = vmatpush1.bf16.msra.mxu0 0
    %493 = vmatprep.subr.bf16.mxu0 0
    %494 = vmatpush1.bf16.msra.mxu0 0
    %495 = vmatprep.mubr.bf16.mxu0 0
    %496 = vmatmul.mubr.bf16.gmra.mrb[0].mxu0 %v458
    %v497 = vpop.f32.mrb[0].mxu0
    %v498 = vadd.f32 %v455, %v497
    %v499 = vpop.f32.mrb[0].mxu0
    %v500 = vpop.f32.mrb[0].mxu0
    %v501 = vpop.f32.mrb[0].mxu0
    %502 = vdwg.mxu0
    %v503 = vmax.f32 %v498, 0.0
    %vm504 = vcmask 1024
    %505 = vst.msk [vmem:[%s6] sm:$0x3] %vm504, %v503
    // Predicated region
    $region30: #{tpu_custom_call.1} parent=1 // pred_check
      _
    $region31: #{tpu_custom_call.1} parent=1 // pred_check_branch
      %507 = sbr.rel (0) target = $region33
    $region32: #{tpu_custom_call.1} parent=1 // pred_region
      _
    $region33: #{tpu_custom_call.1} parent=1 // pred_fallthru
      _
    // Predicated region
    $region34: #{tpu_custom_call.1} parent=1 // pred_check
      _
    $region35: #{tpu_custom_call.1} parent=1 // pred_check_branch
      %509 = sbr.rel (0) target = $region37
    $region36: #{tpu_custom_call.1} parent=1 // pred_region
      _
    $region37: #{tpu_custom_call.1} parent=1 // pred_fallthru
      _
    %510 = vsyncpa [#allocation3], 1

</llo_original>
